<compile_context>
chip_gen: v7x
topology: tpu7x:2x2x1
jax: 0.10.0
libtpu: 0.0.40
codegen_flags: <defaults>
</compile_context>

<pallas_src>
import functools

import jax
import jax.numpy as jnp
from jax import lax
from jax.experimental import pallas as pl
from jax.experimental.pallas import tpu as pltpu


def _round_up(n, m):
    return ((n + m - 1) // m) * m


def _pad_to(x, shape, dtype):
    """Zero-pad + cast, skipping the copy entirely when already conforming."""
    if tuple(x.shape) == tuple(shape) and x.dtype == dtype:
        return x
    out = jnp.zeros(shape, dtype)
    return out.at[tuple(slice(0, s) for s in x.shape)].set(x.astype(dtype))


# ----------------------------------------------------------------------------
# One-time parameter preparation (hoisted out of the per-step path).
# Torch layout:  w_i2h: (H, I+H), b_i2h: (H,), w_h2o: (O, H), b_h2o: (O,)
# Produces (in, out)-layout, zero-padded, lane-dense weights:
#   W1x: (I_pad, H_pad)   x-part of i2h
#   W1h: (H_pad, H_pad)   h-part of i2h (the only weight in the recurrence)
#   W2 : (H_pad, O_pad)
#   biases as (1, N) f32 rows (added post-accumulation, broadcast in-kernel).
# ----------------------------------------------------------------------------
def prepare_params(w_i2h, b_i2h, w_h2o, b_h2o, *, compute_dtype=jnp.bfloat16):
    H, IH = w_i2h.shape
    I = IH - H
    O = w_h2o.shape[0]

    I_pad = _round_up(I, 128)
    H_pad = _round_up(H, 128)
    O_pad = _round_up(O, 128)

    w_t = jnp.transpose(w_i2h)  # (I+H, H): torch -> (in, out) layout, once.
    w1x = jnp.zeros((I_pad, H_pad), compute_dtype)
    w1x = w1x.at[:I, :H].set(w_t[:I, :].astype(compute_dtype))
    w1h = jnp.zeros((H_pad, H_pad), compute_dtype)
    w1h = w1h.at[:H, :H].set(w_t[I:, :].astype(compute_dtype))
    b1 = jnp.zeros((1, H_pad), jnp.float32).at[0, :H].set(
        b_i2h.astype(jnp.float32))

    w2 = jnp.zeros((H_pad, O_pad), compute_dtype)
    w2 = w2.at[:H, :O].set(jnp.transpose(w_h2o).astype(compute_dtype))
    b2 = jnp.zeros((1, O_pad), jnp.float32).at[0, :O].set(
        b_h2o.astype(jnp.float32))

    dims = dict(input_size=I, hidden_size=H, output_size=O,
                I_pad=I_pad, H_pad=H_pad, O_pad=O_pad,
                compute_dtype=compute_dtype)
    return (w1x, w1h, b1, w2, b2), dims


# ----------------------------------------------------------------------------
# Generic M-tiled matmul + bias kernel (weights / bias resident).
# Used for the two non-recurrent projections with M = T*B (MXU-saturating).
# ----------------------------------------------------------------------------
def _matmul_bias_kernel(x_ref, w_ref, b_ref, o_ref):
    acc = jnp.dot(x_ref[...], w_ref[...], preferred_element_type=jnp.float32)
    o_ref[...] = (acc + b_ref[...]).astype(o_ref.dtype)


def _matmul_bias(x, w, b, out_dtype, *, tm_max=256):
    M, K = x.shape
    K2, N = w.shape
    assert K == K2
    TM = min(tm_max, _round_up(M, 8))
    M_pad = _round_up(M, TM)
    x_p = _pad_to(x, (M_pad, K), x.dtype)

    out = pl.pallas_call(
        _matmul_bias_kernel,
        out_shape=jax.ShapeDtypeStruct((M_pad, N), out_dtype),
        grid_spec=pltpu.PrefetchScalarGridSpec(
            num_scalar_prefetch=0,
            grid=(M_pad // TM,),
            in_specs=[
                pl.BlockSpec((TM, K), lambda m: (m, 0)),    # activations tile
                pl.BlockSpec((K, N), lambda m: (0, 0)),     # weight resident
                pl.BlockSpec((1, N), lambda m: (0, 0)),     # bias resident
            ],
            out_specs=pl.BlockSpec((TM, N), lambda m: (m, 0)),
        ),
        compiler_params=pltpu.CompilerParams(
            dimension_semantics=("parallel",)),
        cost_estimate=pl.CostEstimate(
            flops=2 * M_pad * K * N,
            transcendentals=0,
            bytes_accessed=(x_p.size * x_p.dtype.itemsize
                            + w.size * w.dtype.itemsize
                            + b.size * 4
                            + M_pad * N * jnp.zeros((), out_dtype).dtype.itemsize),
        ),
    )(x_p, w, b)
    return out[:M]


# ----------------------------------------------------------------------------
# Recurrent kernel: grid = (batch_tiles, time_chunks), time LAST ("arbitrary").
# Per time chunk: Tt unrolled steps of  h <- tanh(pre_x[t] + h @ W1h).
# The f32 hidden carry is the revisited hfin output block (constant index in
# the time axis => stays VMEM-resident across all chunks).
# ----------------------------------------------------------------------------
def rnn_recurrent_kernel(pre_ref, h0_ref, w1h_ref, hs_ref, hfin_ref, *,
                         t_chunk, seq_len, t_pad, compute_dtype):
    tc = pl.program_id(1)   # time-chunk index: MUST be the last grid axis.

    @pl.when(tc == 0)
    def _():
        # New batch tile: (re)load the initial hidden state into the carry.
        hfin_ref[...] = h0_ref[...]

    t_base = tc * t_chunk
    mask_tail = (t_pad != seq_len)   # static: only if T was padded to a chunk.

    def step(i, h):
        # h: (TB, H_pad) f32 carry.  NOTE: requantized to compute_dtype for the
        # MXU operand each step; tanh bounds the drift (f32 recurrence: pass
        # compute_dtype=jnp.float32 to prepare_params for long sequences).
        pre = pre_ref[i] + jnp.dot(h.astype(compute_dtype), w1h_ref[...],
                                   preferred_element_type=jnp.float32)
        h_new = jnp.tanh(pre)                      # f32, EUP
        hs_ref[i] = h_new.astype(hs_ref.dtype)
        if mask_tail:
            # Padded trailing steps must not advance the carry.
            h_new = jnp.where(t_base + i < seq_len, h_new, h)
        return h_new

    hfin_ref[...] = lax.fori_loop(0, t_chunk, step, hfin_ref[...], unroll=True)


# ----------------------------------------------------------------------------
# Fused-sequence wrapper: runs T recurrent steps with three Pallas calls:
#   (1) pre_x = xs @ W1x + b1         (one big matmul, M = T*B)
#   (2) recurrent kernel over time chunks (only h @ W1h + tanh per step)
#   (3) outs  = hs @ W2 + b2          (one big matmul, M = T*B)
#   xs: (T, B, input_size), h0: (B, hidden_size)
# Returns (outputs (T, B, output_size), final hidden (B, hidden_size)), f32.
# ----------------------------------------------------------------------------
def my_rnn_sequence(params, dims, xs, h0, *, batch_tile_max=256, time_chunk=16):
    w1x, w1h, b1, w2, b2 = params
    T, B, I = xs.shape
    H = h0.shape[1]
    assert I == dims["input_size"] and H == dims["hidden_size"]

    cd = dims["compute_dtype"]
    I_pad, H_pad, O_pad = dims["I_pad"], dims["H_pad"], dims["O_pad"]
    O = dims["output_size"]

    # Batch tiling: raise toward MXU row count when the batch allows.
    B_pad = _round_up(B, 8)
    TB = min(batch_tile_max, B_pad)
    B_pad = _round_up(B_pad, TB)

    # Time chunking: Tt steps per grid iteration; pad T and mask the tail.
    Tt = min(time_chunk, T)
    T_pad = _round_up(T, Tt)

    # --- Phase 1: non-recurrent x-projection, hoisted out of the loop -------
    xs_p = _pad_to(xs, (T_pad, B_pad, I_pad), cd)
    pre_x = _matmul_bias(xs_p.reshape(T_pad * B_pad, I_pad), w1x, b1,
                         jnp.float32)
    pre_x = pre_x.reshape(T_pad, B_pad, H_pad)

    h0_p = _pad_to(h0, (B_pad, H_pad), jnp.float32)

    grid = (B_pad // TB, T_pad // Tt)  # time LAST (sequential carry axis).

    cost = pl.CostEstimate(
        flops=2 * T_pad * B_pad * H_pad * H_pad,
        transcendentals=T_pad * B_pad * H_pad,
        bytes_accessed=(pre_x.size * 4 + h0_p.size * 4
                        + w1h.size * w1h.dtype.itemsize
                        + T_pad * B_pad * H_pad * jnp.zeros((), cd).dtype.itemsize
                        + B_pad * H_pad * 4),
    )

    kernel = functools.partial(rnn_recurrent_kernel, t_chunk=Tt, seq_len=T,
                               t_pad=T_pad, compute_dtype=cd)

    hs, h_fin = pl.pallas_call(
        kernel,
        out_shape=(
            jax.ShapeDtypeStruct((T_pad, B_pad, H_pad), cd),      # h_t (bf16 default)
            jax.ShapeDtypeStruct((B_pad, H_pad), jnp.float32),    # final hidden
        ),
        grid_spec=pltpu.PrefetchScalarGridSpec(
            num_scalar_prefetch=0,
            grid=grid,
            in_specs=[
                pl.BlockSpec((Tt, TB, H_pad), lambda b, tc: (tc, b, 0)),  # pre_x chunk
                pl.BlockSpec((TB, H_pad),     lambda b, tc: (b, 0)),      # h0 tile
                pl.BlockSpec((H_pad, H_pad),  lambda b, tc: (0, 0)),      # W1h resident
            ],
            out_specs=(
                pl.BlockSpec((Tt, TB, H_pad), lambda b, tc: (tc, b, 0)),  # hidden states
                pl.BlockSpec((TB, H_pad),     lambda b, tc: (b, 0)),      # carry / final h
            ),
        ),
        compiler_params=pltpu.CompilerParams(
            dimension_semantics=("parallel", "arbitrary")),  # batch || , time sequential
        cost_estimate=cost,
    )(pre_x, h0_p, w1h)

    # --- Phase 3: h2o projection, hoisted out of the loop -------------------
    outs = _matmul_bias(hs.reshape(T_pad * B_pad, H_pad), w2, b2, jnp.float32)
    outs = outs.reshape(T_pad, B_pad, O_pad)

    return outs[:T, :B, :O], h_fin[:B, :H]


# Single-step forward (exact semantics of MyRNN.forward): T == 1.
def my_rnn_cell(params, dims, x, h):
    outs, h_new = my_rnn_sequence(params, dims, x[None], h)
    return outs[0], h_new


if __name__ == "__main__":
    input_size, hidden_size, output_size = 4, 4, 2
    batch, seq_len = 2, 8

    key = jax.random.PRNGKey(0)
    k_x, k_xs, k_w1, k_b1, k_w2, k_b2 = jax.random.split(key, 6)

    # Deterministic params (mimics torch.nn.Linear uniform(+-1/sqrt(fan_in))).
    fan1 = float(input_size + hidden_size)
    w_i2h = jax.random.uniform(k_w1, (hidden_size, input_size + hidden_size),
                               jnp.float32, -1.0 / jnp.sqrt(fan1), 1.0 / jnp.sqrt(fan1))
    b_i2h = jax.random.uniform(k_b1, (hidden_size,), jnp.float32,
                               -1.0 / jnp.sqrt(fan1), 1.0 / jnp.sqrt(fan1))
    w_h2o = jax.random.uniform(k_w2, (output_size, hidden_size), jnp.float32,
                               -1.0 / jnp.sqrt(float(hidden_size)),
                               1.0 / jnp.sqrt(float(hidden_size)))
    b_h2o = jax.random.uniform(k_b2, (output_size,), jnp.float32,
                               -1.0 / jnp.sqrt(float(hidden_size)),
                               1.0 / jnp.sqrt(float(hidden_size)))

    x = jax.random.normal(k_x, (batch, input_size), jnp.float32)
    xs = jax.random.normal(k_xs, (seq_len, batch, input_size), jnp.float32)
    # MyRNN.get_hidden_size() returns zeros(1, hidden); broadcast to batch.
    h0 = jnp.zeros((batch, hidden_size), jnp.float32)

    # Pure-JAX reference (same math as the torch module).
    def ref_step(h, xt):
        comb = jnp.concatenate([xt, h], axis=1)
        h_new = jnp.tanh(comb @ w_i2h.T + b_i2h)
        return h_new, h_new @ w_h2o.T + b_h2o

    def ref_seq(h, xs_):
        outs_r = []
        for t in range(xs_.shape[0]):
            h, o = ref_step(h, xs_[t])
            outs_r.append(o)
        return jnp.stack(outs_r), h

    # --- f32 path: exact-semantics check (tight tolerance) ------------------
    params32, dims32 = prepare_params(w_i2h, b_i2h, w_h2o, b_h2o,
                                      compute_dtype=jnp.float32)
    out1, h1 = jax.block_until_ready(my_rnn_cell(params32, dims32, x, h0))
    h_exp, out_exp = ref_step(h0, x)
    assert jnp.allclose(h1, h_exp, atol=1e-4), "hidden mismatch (f32 step)"
    assert jnp.allclose(out1, out_exp, atol=1e-4), "output mismatch (f32 step)"

    # Fused multi-step sequence (time-chunked recurrence, hoisted projections).
    outs, h_fin = jax.block_until_ready(my_rnn_sequence(params32, dims32, xs, h0))
    outs_r, h_r = ref_seq(h0, xs)
    assert jnp.allclose(outs, outs_r, atol=1e-4), "output mismatch (f32 sequence)"
    assert jnp.allclose(h_fin, h_r, atol=1e-4), "hidden mismatch (f32 sequence)"

    # Tail-masking path: seq_len not a multiple of the time chunk.
    xs5 = xs[:5]
    outs5, h_fin5 = jax.block_until_ready(
        my_rnn_sequence(params32, dims32, xs5, h0, time_chunk=4))
    outs5_r, h5_r = ref_seq(h0, xs5)
    assert jnp.allclose(outs5, outs5_r, atol=1e-4), "output mismatch (masked tail)"
    assert jnp.allclose(h_fin5, h5_r, atol=1e-4), "hidden mismatch (masked tail)"

    # --- bf16 path (default; v6e/v7x MXU fast path), looser tolerance -------
    params_bf, dims_bf = prepare_params(w_i2h, b_i2h, w_h2o, b_h2o)
    out_bf, h_bf = jax.block_until_ready(my_rnn_cell(params_bf, dims_bf, x, h0))
    assert jnp.allclose(out_bf, out_exp, atol=3e-2, rtol=3e-2), "output mismatch (bf16)"
    assert jnp.allclose(h_bf, h_exp, atol=3e-2, rtol=3e-2), "hidden mismatch (bf16)"

    outs_bf, hfin_bf = jax.block_until_ready(
        my_rnn_sequence(params_bf, dims_bf, xs, h0))
    assert jnp.allclose(outs_bf, outs_r, atol=5e-2, rtol=5e-2), "output mismatch (bf16 seq)"
    assert jnp.allclose(hfin_bf, h_r, atol=5e-2, rtol=5e-2), "hidden mismatch (bf16 seq)"

    print("KERNEL_OK")
</pallas_src>

<mosaic_0001>
module attributes {stable_mosaic.version = 11 : i64} {
  func.func @_matmul_bias_kernel(%arg0: i32, %arg1: memref<8x128xf32, #tpu.memory_space<vmem>>, %arg2: memref<128x128xf32, #tpu.memory_space<vmem>>, %arg3: memref<1x128xf32, #tpu.memory_space<vmem>>, %arg4: memref<8x128xf32, #tpu.memory_space<vmem>>) attributes {dimension_semantics = [#tpu.dimension_semantics<parallel>], iteration_bounds = array<i64: 1>, scalar_prefetch = 0 : i64, scratch_operands = 0 : i64, tpu.core_type = #tpu.core_type<tc>, window_params = [{transform_indices = @transform_0, window_bounds = array<i64: 8, 128>}, {pipeline_mode = #tpu.pipeline_mode<synchronous>, transform_indices = @transform_1, window_bounds = array<i64: 128, 128>}, {pipeline_mode = #tpu.pipeline_mode<synchronous>, transform_indices = @transform_2, window_bounds = array<i64: 1, 128>}, {transform_indices = @transform_3, window_bounds = array<i64: 8, 128>}]} {
    %c0 = arith.constant 0 : index
    %c0_0 = arith.constant 0 : index
    %0 = vector.load %arg1[%c0, %c0_0] : memref<8x128xf32, #tpu.memory_space<vmem>>, vector<8x128xf32>
    %c0_1 = arith.constant 0 : index
    %c0_2 = arith.constant 0 : index
    %1 = vector.load %arg2[%c0_1, %c0_2] : memref<128x128xf32, #tpu.memory_space<vmem>>, vector<128x128xf32>
    %cst = arith.constant dense<0.000000e+00> : vector<8x128xf32>
    %2 = tpu.matmul %0, %1, %cst {dimension_numbers = #tpu.dot_dimension_numbers<[1], [0], [0], [1], [0, 0, 1, 1], [], []>} : vector<8x128xf32>, vector<128x128xf32>, vector<8x128xf32> -> vector<8x128xf32>
    %c0_3 = arith.constant 0 : index
    %c0_4 = arith.constant 0 : index
    %3 = vector.load %arg3[%c0_3, %c0_4] : memref<1x128xf32, #tpu.memory_space<vmem>>, vector<1x128xf32>
    %4 = vector.broadcast %3 : vector<1x128xf32> to vector<8x128xf32>
    %5 = arith.addf %2, %4 : vector<8x128xf32>
    %c0_5 = arith.constant 0 : index
    %c0_6 = arith.constant 0 : index
    %6 = vector.load %arg4[%c0_5, %c0_6] : memref<8x128xf32, #tpu.memory_space<vmem>>, vector<8x128xf32>
    tpu.vector_store %arg4[%c0_5, %c0_6], %5 {strides = array<i32>} : memref<8x128xf32, #tpu.memory_space<vmem>>, vector<8x128xf32>,
    return
  }
  func.func @transform_0(%arg0: i32) -> (i32, i32) {
    %c0_i32 = arith.constant 0 : i32
    %c0_i32_0 = arith.constant 0 : i32
    return %arg0, %c0_i32 : i32, i32
  }
  func.func @transform_1(%arg0: i32) -> (i32, i32) {
    %c0_i32 = arith.constant 0 : i32
    %c0_i32_0 = arith.constant 0 : i32
    %c0_i32_1 = arith.constant 0 : i32
    return %c0_i32, %c0_i32_0 : i32, i32
  }
  func.func @transform_2(%arg0: i32) -> (i32, i32) {
    %c0_i32 = arith.constant 0 : i32
    %c0_i32_0 = arith.constant 0 : i32
    %c0_i32_1 = arith.constant 0 : i32
    return %c0_i32, %c0_i32_0 : i32, i32
  }
  func.func @transform_3(%arg0: i32) -> (i32, i32) {
    %c0_i32 = arith.constant 0 : i32
    %c0_i32_0 = arith.constant 0 : i32
    return %arg0, %c0_i32 : i32, i32
  }
}

</mosaic_0001>

<llo_original>
// kernel: tpu_custom_call.1
$region0: #{tpu_custom_call.1}
  #allocation0 [shape = 'u32[]', space=smem, size = 0x4, offset = 0x4, fixed_abs, tag = 'smem constant byte address 0x4 - core index']
  #allocation1 [shape = 'u32[144,128]{1,0:T(1,128)}', space=vmem, size = 0x12000, scoped, tag = 'internal scratch']
  %s0 = inlined_call_operand.hbm [shape: f32[8,128], index: 0, kind: input, shape index: {}]
  %s1 = inlined_call_operand.hbm [shape: f32[128,128], index: 1, kind: input, shape index: {}]
  %s2 = inlined_call_operand.vmem [shape: f32[1,128], index: 2, kind: input, shape index: {}]
  %s3 = inlined_call_operand.hbm [shape: f32[8,128], index: 3, kind: output, shape index: {}]
  %s4 = sld [smem:[#allocation0]]
  $region30: #{tpu_custom_call.1} parent=0
    _
  %s6 = ssub.s32 1, %s4
  %s7 = scalar_select 0, %s6, %s4
  $region1: #{tpu_custom_call.1} parent=0
    #allocation2 [shape = 'u8[4096]{0}', space=vmem, size = 0x1000, scoped, tag = 'input window, operand 0, single buffered']
    #allocation3 [shape = 's32[1]{0}', space=sflag, size = 0x4, scoped, tag = 'scoped memory for tpu_custom_call.1']
    #allocation4 [shape = 's32[1]{0}', space=sflag, size = 0x4, scoped, tag = 'scoped memory for tpu_custom_call.1']
    #allocation5 [shape = 'u8[65536]{0}', space=vmem, size = 0x10000, scoped, tag = 'input window, operand 1, single buffered']
    #allocation6 [shape = 's32[1]{0}', space=sflag, size = 0x4, scoped, tag = 'scoped memory for tpu_custom_call.1']
    #allocation7 [shape = 'u8[4096]{0}', space=vmem, size = 0x1000, scoped, tag = 'output window, operand 0, single buffered']
    %8 = vsyncpa [#allocation3], 0
    %9 = vsyncpa [#allocation6], 0
    %10 = vsyncpa [#allocation4], 0
    // Predicated region
    $region2: #{tpu_custom_call.1} parent=1 // pred_check
      _
    $region3: #{tpu_custom_call.1} parent=1 // pred_check_branch
      %12 = sbr.rel (0) target = $region5
    $region4: #{tpu_custom_call.1} parent=1 // pred_region
      %s14 = ssub.s32 128, 128
      %15 = vsyncadd [#allocation3], %s14
      %s17 = sshll.u32 [#allocation2], 4
      %s18 = int_to_ptr.vmem [resolvable:$true] %s17
      %20 = dma.hbm_to_vmem [thread:$0]  %s0, 128, %s18, [#allocation3]
    $region5: #{tpu_custom_call.1} parent=1 // pred_fallthru
      _
    // Predicated region
    $region6: #{tpu_custom_call.1} parent=1 // pred_check
      _
    $region7: #{tpu_custom_call.1} parent=1 // pred_check_branch
      %22 = sbr.rel (0) target = $region9
    $region8: #{tpu_custom_call.1} parent=1 // pred_region
      %s24 = ssub.s32 2048, 2048
      %25 = vsyncadd [#allocation6], %s24
      %s26 = sshll.u32 [#allocation5], 4
      %s27 = int_to_ptr.vmem [resolvable:$true] %s26
      %32 = dma.hbm_to_vmem [thread:$0]  %s1, 2048, %s27, [#allocation6], 128, 128, 8
    $region9: #{tpu_custom_call.1} parent=1 // pred_fallthru
      _
    // Predicated region
    $region10: #{tpu_custom_call.1} parent=1 // pred_check
      _
    $region11: #{tpu_custom_call.1} parent=1 // pred_check_branch
      %34 = sbr.rel (0) target = $region13
    $region12: #{tpu_custom_call.1} parent=1 // pred_region
      _
    $region13: #{tpu_custom_call.1} parent=1 // pred_fallthru
      _
    // Predicated region
    $region14: #{tpu_custom_call.1} parent=1 // pred_check
      _
    $region15: #{tpu_custom_call.1} parent=1 // pred_check_branch
      %36 = sbr.rel (0) target = $region17
    $region16: #{tpu_custom_call.1} parent=1 // pred_region
      %37 = dma.done [#allocation3], 128
    $region17: #{tpu_custom_call.1} parent=1 // pred_fallthru
      _
    // Predicated region
    $region18: #{tpu_custom_call.1} parent=1 // pred_check
      _
    $region19: #{tpu_custom_call.1} parent=1 // pred_check_branch
      %39 = sbr.rel (0) target = $region21
    $region20: #{tpu_custom_call.1} parent=1 // pred_region
      %40 = dma.done [#allocation6], 2048
    $region21: #{tpu_custom_call.1} parent=1 // pred_fallthru
      _
    %v41 = vld [vmem:[#allocation2] sm:$0xff]
    %v42 = vld [vmem:[#allocation5] sm:$0xff]
    %v43 = vld [vmem:[#allocation5 + $0x8] sm:$0xff]
    %v44 = vld [vmem:[#allocation5 + $0x10] sm:$0xff]
    %v45 = vld [vmem:[#allocation5 + $0x18] sm:$0xff]
    %v46 = vld [vmem:[#allocation5 + $0x20] sm:$0xff]
    %v47 = vld [vmem:[#allocation5 + $0x28] sm:$0xff]
    %v48 = vld [vmem:[#allocation5 + $0x30] sm:$0xff]
    %v49 = vld [vmem:[#allocation5 + $0x38] sm:$0xff]
    %v50 = vld [vmem:[#allocation5 + $0x40] sm:$0xff]
    %v51 = vld [vmem:[#allocation5 + $0x48] sm:$0xff]
    %v52 = vld [vmem:[#allocation5 + $0x50] sm:$0xff]
    %v53 = vld [vmem:[#allocation5 + $0x58] sm:$0xff]
    %v54 = vld [vmem:[#allocation5 + $0x60] sm:$0xff]
    %v55 = vld [vmem:[#allocation5 + $0x68] sm:$0xff]
    %v56 = vld [vmem:[#allocation5 + $0x70] sm:$0xff]
    %v57 = vld [vmem:[#allocation5 + $0x78] sm:$0xff]
    %v58 = vld [vmem:[%s2] sm:$0x1]
    %v60 = vlaneseq
    %v61 = vshrl.u32 %v60, 7
    %v62 = vsub.s32 0, %v61
    %v63 = vrot.slane %v58, %v62
    %65 = vmatprep.subr.mxu0 0.0
    %66 = vmatpush1.msra.mxu0 %v42
    %67 = vmatprep.subr.mxu0 0.0
    %68 = vmatpush1.msra.mxu0 %v43
    %69 = vmatprep.subr.mxu0 0.0
    %70 = vmatpush1.msra.mxu0 %v44
    %71 = vmatprep.subr.mxu0 0.0
    %72 = vmatpush1.msra.mxu0 %v45
    %73 = vmatprep.subr.mxu0 0.0
    %74 = vmatpush1.msra.mxu0 %v46
    %75 = vmatprep.subr.mxu0 0.0
    %76 = vmatpush1.msra.mxu0 %v47
    %77 = vmatprep.subr.mxu0 0.0
    %78 = vmatpush1.msra.mxu0 %v48
    %79 = vmatprep.subr.mxu0 0.0
    %80 = vmatpush1.msra.mxu0 %v49
    %81 = vmatprep.subr.mxu0 0.0
    %82 = vmatpush1.msra.mxu0 %v50
    %83 = vmatprep.subr.mxu0 0.0
    %84 = vmatpush1.msra.mxu0 %v51
    %85 = vmatprep.subr.mxu0 0.0
    %86 = vmatpush1.msra.mxu0 %v52
    %87 = vmatprep.subr.mxu0 0.0
    %88 = vmatpush1.msra.mxu0 %v53
    %89 = vmatprep.subr.mxu0 0.0
    %90 = vmatpush1.msra.mxu0 %v54
    %91 = vmatprep.subr.mxu0 0.0
    %92 = vmatpush1.msra.mxu0 %v55
    %93 = vmatprep.subr.mxu0 0.0
    %94 = vmatpush1.msra.mxu0 %v56
    %95 = vmatprep.subr.mxu0 0.0
    %96 = vmatpush1.msra.mxu0 %v57
    %97 = vmatprep.subr.mxu0 0.0
    %98 = vmatpush1.msra.mxu0 0.0
    %99 = vmatprep.subr.mxu0 0.0
    %100 = vmatpush1.msra.mxu0 0.0
    %101 = vmatprep.subr.mxu0 0.0
    %102 = vmatpush1.msra.mxu0 0.0
    %103 = vmatprep.subr.mxu0 0.0
    %104 = vmatpush1.msra.mxu0 0.0
    %105 = vmatprep.subr.mxu0 0.0
    %106 = vmatpush1.msra.mxu0 0.0
    %107 = vmatprep.subr.mxu0 0.0
    %108 = vmatpush1.msra.mxu0 0.0
    %109 = vmatprep.subr.mxu0 0.0
    %110 = vmatpush1.msra.mxu0 0.0
    %111 = vmatprep.subr.mxu0 0.0
    %112 = vmatpush1.msra.mxu0 0.0
    %113 = vmatprep.subr.mxu0 0.0
    %114 = vmatpush1.msra.mxu0 0.0
    %115 = vmatprep.subr.mxu0 0.0
    %116 = vmatpush1.msra.mxu0 0.0
    %117 = vmatprep.subr.mxu0 0.0
    %118 = vmatpush1.msra.mxu0 0.0
    %119 = vmatprep.subr.mxu0 0.0
    %120 = vmatpush1.msra.mxu0 0.0
    %121 = vmatprep.subr.mxu0 0.0
    %122 = vmatpush1.msra.mxu0 0.0
    %123 = vmatprep.subr.mxu0 0.0
    %124 = vmatpush1.msra.mxu0 0.0
    %125 = vmatprep.subr.mxu0 0.0
    %126 = vmatpush1.msra.mxu0 0.0
    %127 = vmatprep.subr.mxu0 0.0
    %128 = vmatpush1.msra.mxu0 0.0
    %129 = vmatprep.mubr.f32.mxu0 0.0
    %130 = vmatmul.mubr.f32.gmra.mrb[0].mxu0 %v41
    %v131 = vpop.f32.mrb[0].mxu0
    %v132 = vadd.f32 %v63, %v131
    %v133 = vpop.f32.mrb[0].mxu0
    %134 = vdwg.mxu0
    %135 = vst [vmem:[#allocation7] sm:$0xff] %v132
    // Predicated region
    $region22: #{tpu_custom_call.1} parent=1 // pred_check
      _
    $region23: #{tpu_custom_call.1} parent=1 // pred_check_branch
      %137 = sbr.rel (0) target = $region25
    $region24: #{tpu_custom_call.1} parent=1 // pred_region
      %s139 = ssub.s32 128, 128
      %140 = vsyncadd [#allocation4], %s139
      %s142 = sshll.u32 [#allocation7], 4
      %s143 = int_to_ptr.vmem [resolvable:$true] %s142
      %145 = dma.vmem_to_hbm [thread:$0]  %s143, 128, %s3, [#allocation4]
    $region25: #{tpu_custom_call.1} parent=1 // pred_fallthru
      _
    // Predicated region
    $region26: #{tpu_custom_call.1} parent=1 // pred_check
      _
    $region27: #{tpu_custom_call.1} parent=1 // pred_check_branch
      %147 = sbr.rel (0) target = $region29
    $region28: #{tpu_custom_call.1} parent=1 // pred_region
      %148 = dma.done [#allocation4], 128
    $region29: #{tpu_custom_call.1} parent=1 // pred_fallthru
      _
    %149 = vsyncpa [#allocation3], 1
    %150 = vsyncpa [#allocation6], 1
    %151 = vsyncpa [#allocation4], 1

</llo_original>
